<compile_context>
chip_gen: v7x
topology: tpu7x:2x2x1
jax: 0.10.0
libtpu: 0.0.40
codegen_flags: <defaults>
</compile_context>

<pallas_src>
import functools

import jax
import jax.numpy as jnp
from jax.experimental import pallas as pl
from jax.experimental.pallas import tpu as pltpu

LANE = 128
SUBLANE = 8


def _round_up(x, m):
    return (x + m - 1) // m * m


def _pad2d(a, rows, cols):
    r, c = a.shape
    return jnp.pad(a, ((0, rows - r), (0, cols - c)))


def dueling_dqn_kernel(x_ref, w1_ref, b1_ref, wh_ref, bh_ref,
                       wv2_ref, bv2_ref, wa2_ref, ba2_ref,
                       q_ref, *, hidden_pad, action_dim):
    x = x_ref[...]                                                   # (TB, S) bf16

    # feature_layer: Linear(state_dim, H) + ReLU  (bf16 MXU inputs, f32 acc)
    f = jnp.dot(x, w1_ref[...],
                preferred_element_type=jnp.float32) + b1_ref[...]
    f = jnp.maximum(f, 0.0)                                          # (TB, Hp) f32

    # fused hidden layers of value+advantage streams: single MXU pass
    h2 = jnp.dot(f.astype(jnp.bfloat16), wh_ref[...],
                 preferred_element_type=jnp.float32) + bh_ref[...]
    h2 = jnp.maximum(h2, 0.0)                                        # (TB, 2*Hp)

    vh = h2[:, :hidden_pad]                                          # (TB, Hp)
    ah = h2[:, hidden_pad:]                                          # (TB, Hp)

    # value head: (H, 1) matmul replaced by VPU mul + XLU lane-reduce
    v = jnp.sum(vh * wv2_ref[...], axis=1, keepdims=True) + bv2_ref[...]   # (TB, 1)

    # advantage head: lane-padded output (padded columns exactly zero)
    a = jnp.dot(ah.astype(jnp.bfloat16), wa2_ref[...],
                preferred_element_type=jnp.float32) + ba2_ref[...]   # (TB, Ap)

    # padded lanes are zero, so full-lane sum / true action_dim == true mean
    a_mean = jnp.sum(a, axis=1, keepdims=True) * (1.0 / action_dim)

    # q = v + (a - mean(a)); padded output lanes sliced off in the wrapper
    q_ref[...] = v + (a - a_mean)


def dueling_dqn_forward(state, params, *, tile_b=128):
    (w1, b1, wv1, bv1, wv2, bv2, wa1, ba1, wa2, ba2) = params
    B, S = state.shape
    H = w1.shape[1]
    A = wa2.shape[1]

    Hp = _round_up(H, LANE)          # lane-aligned hidden width
    Ap = _round_up(A, LANE)          # lane-dense output width

    # ---- parameter packing (done once outside the kernel) ----
    w1_p = _pad2d(w1, S, Hp).astype(jnp.bfloat16)                    # (S, Hp)
    b1_p = _pad2d(b1, 1, Hp)                                         # (1, Hp) f32
    wh_p = jnp.concatenate([_pad2d(wv1, Hp, Hp), _pad2d(wa1, Hp, Hp)],
                           axis=1).astype(jnp.bfloat16)              # (Hp, 2Hp)
    bh_p = jnp.concatenate([_pad2d(bv1, 1, Hp), _pad2d(ba1, 1, Hp)],
                           axis=1)                                   # (1, 2Hp) f32
    wv2_row = _pad2d(wv2.T, 1, Hp)                                   # (1, Hp) f32 (VPU path)
    bv2_p = bv2.reshape(1, 1)                                        # (1, 1)  f32
    wa2_p = _pad2d(wa2, Hp, Ap).astype(jnp.bfloat16)                 # (Hp, Ap)
    ba2_p = _pad2d(ba2, 1, Ap)                                       # (1, Ap) f32

    # ---- batch tiling ----
    tb = min(tile_b, _round_up(B, SUBLANE))
    tb = _round_up(tb, SUBLANE)
    B_pad = _round_up(B, tb)
    state_p = jnp.pad(state, ((0, B_pad - B), (0, 0))).astype(jnp.bfloat16)

    def resident(arr):   # weights/biases: single block, VMEM-resident across steps
        return pl.BlockSpec(arr.shape, lambda i: (0, 0))

    weights = (w1_p, b1_p, wh_p, bh_p, wv2_row, bv2_p, wa2_p, ba2_p)

    kernel = functools.partial(dueling_dqn_kernel,
                               hidden_pad=Hp, action_dim=A)

    flops = 2 * B_pad * (S * Hp + Hp * 2 * Hp + Hp + Hp * Ap)
    bytes_accessed = (state_p.size * 2 + sum(w.size * w.dtype.itemsize for w in weights)
                      + B_pad * Ap * 4)

    q_pad = pl.pallas_call(
        kernel,
        out_shape=jax.ShapeDtypeStruct((B_pad, Ap), jnp.float32),
        grid=(B_pad // tb,),
        in_specs=[pl.BlockSpec((tb, S), lambda i: (i, 0))]
                 + [resident(w) for w in weights],
        out_specs=pl.BlockSpec((tb, Ap), lambda i: (i, 0)),
        compiler_params=pltpu.CompilerParams(
            dimension_semantics=("parallel",)),
        cost_estimate=pl.CostEstimate(flops=flops, transcendentals=0,
                                      bytes_accessed=bytes_accessed),
    )(state_p, *weights)

    return q_pad[:B, :A]


def init_params(key, state_dim, action_dim, hidden_dim):
    ks = jax.random.split(key, 5)

    def lin(k, fan_in, fan_out):
        bound = 1.0 / jnp.sqrt(fan_in)
        kw, kb = jax.random.split(k)
        w = jax.random.uniform(kw, (fan_in, fan_out), jnp.float32, -bound, bound)
        b = jax.random.uniform(kb, (1, fan_out), jnp.float32, -bound, bound)
        return w, b

    w1, b1 = lin(ks[0], state_dim, hidden_dim)
    wv1, bv1 = lin(ks[1], hidden_dim, hidden_dim)
    wv2, bv2 = lin(ks[2], hidden_dim, 1)
    wa1, ba1 = lin(ks[3], hidden_dim, hidden_dim)
    wa2, ba2 = lin(ks[4], hidden_dim, action_dim)
    return (w1, b1, wv1, bv1, wv2, bv2, wa1, ba1, wa2, ba2)


def reference_forward(state, params):
    (w1, b1, wv1, bv1, wv2, bv2, wa1, ba1, wa2, ba2) = params
    f = jax.nn.relu(state @ w1 + b1)
    v = jax.nn.relu(f @ wv1 + bv1) @ wv2 + bv2
    a = jax.nn.relu(f @ wa1 + ba1) @ wa2 + ba2
    return v + (a - a.mean(axis=1, keepdims=True))


if __name__ == "__main__":
    # Small shapes; tile_b=8 so the batch grid has 3 steps (exercises pipelining).
    B, STATE_DIM, ACTION_DIM, HIDDEN_DIM = 24, 16, 4, 32

    key = jax.random.PRNGKey(0)
    k_x, k_p = jax.random.split(key)
    state = jax.random.normal(k_x, (B, STATE_DIM), dtype=jnp.float32)
    params = init_params(k_p, STATE_DIM, ACTION_DIM, HIDDEN_DIM)

    fwd = jax.jit(functools.partial(dueling_dqn_forward, tile_b=8))
    q = jax.block_until_ready(fwd(state, params))

    q_ref = reference_forward(state, params)
    assert q.shape == (B, ACTION_DIM)
    # bf16 MXU inputs (f32 accumulation) -> relaxed tolerance vs f32 reference
    err = float(jnp.max(jnp.abs(q - q_ref)))
    assert jnp.allclose(q, q_ref, atol=3e-2, rtol=3e-2), \
        f"mismatch vs reference, max abs err={err}"

    print("KERNEL_OK")
</pallas_src>

<mosaic_0001>
module attributes {stable_mosaic.version = 11 : i64} {
  func.func @dueling_dqn_kernel(%arg0: i32, %arg1: memref<8x16xbf16, #tpu.memory_space<vmem>>, %arg2: memref<16x128xbf16, #tpu.memory_space<vmem>>, %arg3: memref<1x128xf32, #tpu.memory_space<vmem>>, %arg4: memref<128x256xbf16, #tpu.memory_space<vmem>>, %arg5: memref<1x256xf32, #tpu.memory_space<vmem>>, %arg6: memref<1x128xf32, #tpu.memory_space<vmem>>, %arg7: memref<1x1xf32, #tpu.memory_space<vmem>>, %arg8: memref<128x128xbf16, #tpu.memory_space<vmem>>, %arg9: memref<1x128xf32, #tpu.memory_space<vmem>>, %arg10: memref<8x128xf32, #tpu.memory_space<vmem>>) attributes {dimension_semantics = [#tpu.dimension_semantics<parallel>], iteration_bounds = array<i64: 3>, scalar_prefetch = 0 : i64, scratch_operands = 0 : i64, tpu.core_type = #tpu.core_type<tc>, window_params = [{transform_indices = @transform_0, window_bounds = array<i64: 8, 16>}, {pipeline_mode = #tpu.pipeline_mode<synchronous>, transform_indices = @transform_1, window_bounds = array<i64: 16, 128>}, {pipeline_mode = #tpu.pipeline_mode<synchronous>, transform_indices = @transform_2, window_bounds = array<i64: 1, 128>}, {pipeline_mode = #tpu.pipeline_mode<synchronous>, transform_indices = @transform_3, window_bounds = array<i64: 128, 256>}, {pipeline_mode = #tpu.pipeline_mode<synchronous>, transform_indices = @transform_4, window_bounds = array<i64: 1, 256>}, {pipeline_mode = #tpu.pipeline_mode<synchronous>, transform_indices = @transform_5, window_bounds = array<i64: 1, 128>}, {pipeline_mode = #tpu.pipeline_mode<synchronous>, transform_indices = @transform_6, window_bounds = array<i64: 1, 1>}, {pipeline_mode = #tpu.pipeline_mode<synchronous>, transform_indices = @transform_7, window_bounds = array<i64: 128, 128>}, {pipeline_mode = #tpu.pipeline_mode<synchronous>, transform_indices = @transform_8, window_bounds = array<i64: 1, 128>}, {transform_indices = @transform_9, window_bounds = array<i64: 8, 128>}]} {
    %c0 = arith.constant 0 : index
    %c0_0 = arith.constant 0 : index
    %0 = vector.load %arg1[%c0, %c0_0] : memref<8x16xbf16, #tpu.memory_space<vmem>>, vector<8x16xbf16>
    %c0_1 = arith.constant 0 : index
    %c0_2 = arith.constant 0 : index
    %1 = vector.load %arg2[%c0_1, %c0_2] : memref<16x128xbf16, #tpu.memory_space<vmem>>, vector<16x128xbf16>
    %cst = arith.constant dense<0.000000e+00> : vector<8x128xf32>
    %2 = tpu.matmul %0, %1, %cst {dimension_numbers = #tpu.dot_dimension_numbers<[1], [0], [0], [1], [0, 0, 1, 1], [], []>} : vector<8x16xbf16>, vector<16x128xbf16>, vector<8x128xf32> -> vector<8x128xf32>
    %c0_3 = arith.constant 0 : index
    %c0_4 = arith.constant 0 : index
    %3 = vector.load %arg3[%c0_3, %c0_4] : memref<1x128xf32, #tpu.memory_space<vmem>>, vector<1x128xf32>
    %4 = vector.broadcast %3 : vector<1x128xf32> to vector<8x128xf32>
    %5 = arith.addf %2, %4 : vector<8x128xf32>
    %cst_5 = arith.constant 0.000000e+00 : f32
    %6 = vector.broadcast %cst_5 : f32 to vector<8x128xf32>
    %7 = arith.maximumf %5, %6 : vector<8x128xf32>
    %8 = arith.truncf %7 : vector<8x128xf32> to vector<8x128xbf16>
    %c0_6 = arith.constant 0 : index
    %c0_7 = arith.constant 0 : index
    %9 = vector.load %arg4[%c0_6, %c0_7] : memref<128x256xbf16, #tpu.memory_space<vmem>>, vector<128x256xbf16>
    %cst_8 = arith.constant dense<0.000000e+00> : vector<8x256xf32>
    %10 = tpu.matmul %8, %9, %cst_8 {dimension_numbers = #tpu.dot_dimension_numbers<[1], [0], [0], [1], [0, 0, 1, 1], [], []>} : vector<8x128xbf16>, vector<128x256xbf16>, vector<8x256xf32> -> vector<8x256xf32>
    %c0_9 = arith.constant 0 : index
    %c0_10 = arith.constant 0 : index
    %11 = vector.load %arg5[%c0_9, %c0_10] : memref<1x256xf32, #tpu.memory_space<vmem>>, vector<1x256xf32>
    %12 = vector.broadcast %11 : vector<1x256xf32> to vector<8x256xf32>
    %13 = arith.addf %10, %12 : vector<8x256xf32>
    %cst_11 = arith.constant 0.000000e+00 : f32
    %14 = vector.broadcast %cst_11 : f32 to vector<8x256xf32>
    %15 = arith.maximumf %13, %14 : vector<8x256xf32>
    %16 = vector.extract_strided_slice %15 {offsets = [0, 0], sizes = [8, 128], strides = [1, 1]} : vector<8x256xf32> to vector<8x128xf32>
    %17 = vector.extract_strided_slice %15 {offsets = [0, 128], sizes = [8, 128], strides = [1, 1]} : vector<8x256xf32> to vector<8x128xf32>
    %c0_12 = arith.constant 0 : index
    %c0_13 = arith.constant 0 : index
    %18 = vector.load %arg6[%c0_12, %c0_13] : memref<1x128xf32, #tpu.memory_space<vmem>>, vector<1x128xf32>
    %19 = vector.broadcast %18 : vector<1x128xf32> to vector<8x128xf32>
    %20 = arith.mulf %16, %19 : vector<8x128xf32>
    %cst_14 = arith.constant dense<0.000000e+00> : vector<8xf32>
    %21 = vector.multi_reduction <add>, %20, %cst_14 [1] : vector<8x128xf32> to vector<8xf32>
    %22 = vector.shape_cast %21 : vector<8xf32> to vector<8x1xf32>
    %c0_15 = arith.constant 0 : index
    %c0_16 = arith.constant 0 : index
    %23 = vector.load %arg7[%c0_15, %c0_16] : memref<1x1xf32, #tpu.memory_space<vmem>>, vector<1x1xf32>
    %24 = vector.broadcast %23 : vector<1x1xf32> to vector<8x1xf32>
    %25 = arith.addf %22, %24 : vector<8x1xf32>
    %26 = arith.truncf %17 : vector<8x128xf32> to vector<8x128xbf16>
    %c0_17 = arith.constant 0 : index
    %c0_18 = arith.constant 0 : index
    %27 = vector.load %arg8[%c0_17, %c0_18] : memref<128x128xbf16, #tpu.memory_space<vmem>>, vector<128x128xbf16>
    %cst_19 = arith.constant dense<0.000000e+00> : vector<8x128xf32>
    %28 = tpu.matmul %26, %27, %cst_19 {dimension_numbers = #tpu.dot_dimension_numbers<[1], [0], [0], [1], [0, 0, 1, 1], [], []>} : vector<8x128xbf16>, vector<128x128xbf16>, vector<8x128xf32> -> vector<8x128xf32>
    %c0_20 = arith.constant 0 : index
    %c0_21 = arith.constant 0 : index
    %29 = vector.load %arg9[%c0_20, %c0_21] : memref<1x128xf32, #tpu.memory_space<vmem>>, vector<1x128xf32>
    %30 = vector.broadcast %29 : vector<1x128xf32> to vector<8x128xf32>
    %31 = arith.addf %28, %30 : vector<8x128xf32>
    %cst_22 = arith.constant dense<0.000000e+00> : vector<8xf32>
    %32 = vector.multi_reduction <add>, %31, %cst_22 [1] : vector<8x128xf32> to vector<8xf32>
    %33 = vector.shape_cast %32 : vector<8xf32> to vector<8x1xf32>
    %cst_23 = arith.constant 2.500000e-01 : f32
    %34 = vector.broadcast %cst_23 : f32 to vector<8x1xf32>
    %35 = arith.mulf %33, %34 : vector<8x1xf32>
    %36 = vector.broadcast %35 : vector<8x1xf32> to vector<8x128xf32>
    %37 = arith.subf %31, %36 : vector<8x128xf32>
    %38 = vector.broadcast %25 : vector<8x1xf32> to vector<8x128xf32>
    %39 = arith.addf %38, %37 : vector<8x128xf32>
    %c0_24 = arith.constant 0 : index
    %c0_25 = arith.constant 0 : index
    %40 = vector.load %arg10[%c0_24, %c0_25] : memref<8x128xf32, #tpu.memory_space<vmem>>, vector<8x128xf32>
    tpu.vector_store %arg10[%c0_24, %c0_25], %39 {strides = array<i32>} : memref<8x128xf32, #tpu.memory_space<vmem>>, vector<8x128xf32>,
    return
  }
  func.func @transform_0(%arg0: i32) -> (i32, i32) {
    %c0_i32 = arith.constant 0 : i32
    %c0_i32_0 = arith.constant 0 : i32
    return %arg0, %c0_i32 : i32, i32
  }
  func.func @transform_1(%arg0: i32) -> (i32, i32) {
    %c0_i32 = arith.constant 0 : i32
    %c0_i32_0 = arith.constant 0 : i32
    %c0_i32_1 = arith.constant 0 : i32
    return %c0_i32, %c0_i32_0 : i32, i32
  }
  func.func @transform_2(%arg0: i32) -> (i32, i32) {
    %c0_i32 = arith.constant 0 : i32
    %c0_i32_0 = arith.constant 0 : i32
    %c0_i32_1 = arith.constant 0 : i32
    return %c0_i32, %c0_i32_0 : i32, i32
  }
  func.func @transform_3(%arg0: i32) -> (i32, i32) {
    %c0_i32 = arith.constant 0 : i32
    %c0_i32_0 = arith.constant 0 : i32
    %c0_i32_1 = arith.constant 0 : i32
    return %c0_i32, %c0_i32_0 : i32, i32
  }
  func.func @transform_4(%arg0: i32) -> (i32, i32) {
    %c0_i32 = arith.constant 0 : i32
    %c0_i32_0 = arith.constant 0 : i32
    %c0_i32_1 = arith.constant 0 : i32
    return %c0_i32, %c0_i32_0 : i32, i32
  }
  func.func @transform_5(%arg0: i32) -> (i32, i32) {
    %c0_i32 = arith.constant 0 : i32
    %c0_i32_0 = arith.constant 0 : i32
    %c0_i32_1 = arith.constant 0 : i32
    return %c0_i32, %c0_i32_0 : i32, i32
  }
  func.func @transform_6(%arg0: i32) -> (i32, i32) {
    %c0_i32 = arith.constant 0 : i32
    %c0_i32_0 = arith.constant 0 : i32
    %c0_i32_1 = arith.constant 0 : i32
    return %c0_i32, %c0_i32_0 : i32, i32
  }
  func.func @transform_7(%arg0: i32) -> (i32, i32) {
    %c0_i32 = arith.constant 0 : i32
    %c0_i32_0 = arith.constant 0 : i32
    %c0_i32_1 = arith.constant 0 : i32
    return %c0_i32, %c0_i32_0 : i32, i32
  }
  func.func @transform_8(%arg0: i32) -> (i32, i32) {
    %c0_i32 = arith.constant 0 : i32
    %c0_i32_0 = arith.constant 0 : i32
    %c0_i32_1 = arith.constant 0 : i32
    return %c0_i32, %c0_i32_0 : i32, i32
  }
  func.func @transform_9(%arg0: i32) -> (i32, i32) {
    %c0_i32 = arith.constant 0 : i32
    %c0_i32_0 = arith.constant 0 : i32
    return %arg0, %c0_i32 : i32, i32
  }
}

</mosaic_0001>

<llo_original>
// kernel: dueling_dqn_forward.1
$region0: #{dueling_dqn_forward.1}
  #allocation0 [shape = 'u32[]', space=smem, size = 0x4, offset = 0x4, fixed_abs, tag = 'smem constant byte address 0x4 - core index']
  #allocation1 [shape = 'u32[144,128]{1,0:T(1,128)}', space=vmem, size = 0x12000, scoped, tag = 'internal scratch']
  #allocation2 [shape = 'f32[1,1]{1,0:T(1,128)S(1)}', space=vmem, size = 0x200, scoped, tag = 'scoped memory for dueling_dqn_forward.1']
  %s0 = inlined_call_operand.vmem [shape: bf16[24,16], index: 0, kind: input, shape index: {}]
  %s1 = inlined_call_operand.vmem [shape: bf16[16,128], index: 1, kind: input, shape index: {}]
  %s2 = inlined_call_operand.vmem [shape: f32[1,128], index: 2, kind: input, shape index: {}]
  %s3 = inlined_call_operand.vmem [shape: bf16[128,256], index: 3, kind: input, shape index: {}]
  %s4 = inlined_call_operand.vmem [shape: f32[1,256], index: 4, kind: input, shape index: {}]
  %s5 = inlined_call_operand.vmem [shape: f32[1,128], index: 5, kind: input, shape index: {}]
  %s6 = inlined_call_operand.<no memory space> [shape: f32[1,1], index: 6, kind: input, shape index: {}]
  %s7 = inlined_call_operand.vmem [shape: bf16[128,128], index: 7, kind: input, shape index: {}]
  %s8 = inlined_call_operand.vmem [shape: f32[1,128], index: 8, kind: input, shape index: {}]
  %s9 = inlined_call_operand.vmem [shape: f32[24,128], index: 9, kind: output, shape index: {}]
  %s10 = sld [smem:[#allocation0]]
  $region69: #{dueling_dqn_forward.1} parent=0
    _
  %s12 = ssub.s32 1, %s10
  %s13 = scalar_select 0, %s12, %s10
  %v14 = vstv %s6
  %15 = vst [vmem:[#allocation2] sm:$0x1] %v14
  loop: start=0, step=1, limit=5
  $region2: #{dueling_dqn_forward.1} parent=0 // loop_pre_header
    _
  $region3: #{dueling_dqn_forward.1} parent=0 // loop_header
    %s17 = sphi 0, %s21
    %p18 = scmp.ge.s32.totalorder %s17, 5
    %s27 = sphi 0, %s29
    %s30 = sphi 0, %s27
    %s31 = sphi 0, %s30
    %s47 = sphi 0, %s31
    %s51 = sphi 0, %s51
    %s53 = sphi 0, %s51
    %s54 = sphi 0, %s53
    %s68 = sphi 0, %s54
    %s72 = sphi 0, %s72
    %s74 = sphi 0, %s72
    %s75 = sphi 0, %s74
    %s89 = sphi 0, %s75
    %s93 = sphi 0, %s93
    %s95 = sphi 0, %s93
    %s96 = sphi 0, %s95
    %s110 = sphi 0, %s96
    %s114 = sphi 0, %s114
    %s116 = sphi 0, %s114
    %s117 = sphi 0, %s116
    %s131 = sphi 0, %s117
    %s135 = sphi 0, %s135
    %s137 = sphi 0, %s135
    %s138 = sphi 0, %s137
    %s152 = sphi 0, %s138
    %s156 = sphi 0, %s156
    %s158 = sphi 0, %s156
    %s159 = sphi 0, %s158
    %s173 = sphi 0, %s159
    %s177 = sphi 0, %s177
    %s179 = sphi 0, %s177
    %s180 = sphi 0, %s179
    %s194 = sphi 0, %s180
    %s198 = sphi 0, %s198
    %s200 = sphi 0, %s198
    %s201 = sphi 0, %s200
    %s215 = sphi 0, %s201
    %s221 = sphi 0, %s223
    %s224 = sphi 0, %s221
    %s225 = sphi 0, %s224
    %s241 = sphi 0, %s225
  $region4: #{dueling_dqn_forward.1} parent=0 // loop_header_branch
    %20 = sbr.rel (%p18) target = $region8
  $region5: #{dueling_dqn_forward.1} parent=0 // loop_body
    %s22 = ssub.s32 %s17, 1
    %s23 = ssub.s32 %s17, 2
    %s24 = sadd.s32 %s17, 1
    %s25 = ssub.s32 %s17, %s24
    %p26 = scmp.eq.s32.totalorder %s25, 0
    %s28 = sadd.s32 %s27, 1
    %s29 = scalar_select %p26, %s27, %s28
    %p32 = pneg %p26
    %p33 = scmp.eq.s32.totalorder %s17, 2
    %p34 = por %p32, %p33
    %p35 = scmp.ne.s32.totalorder %s27, %s30
    %p36 = scmp.eq.s32.totalorder %s17, 0
    %p37 = por %p35, %p36
    %p38 = scmp.ne.s32.totalorder %s27, %s30
    %p39 = scmp.eq.s32.totalorder %s22, 2
    %p40 = por %p38, %p39
    %p41 = scmp.ne.s32.totalorder %s30, %s31
    %p42 = scmp.eq.s32.totalorder %s22, 0
    %p43 = por %p41, %p42
    %p44 = scmp.ne.s32.totalorder %s30, %s31
    %p45 = scmp.eq.s32.totalorder %s23, 2
    %p46 = por %p44, %p45
    %p48 = scmp.ne.s32.totalorder %s31, %s47
    %p49 = scmp.eq.s32.totalorder %s23, 0
    %p50 = por %p48, %p49
    %s52 = sadd.s32 %s51, 1
    %p55 = scmp.eq.s32.totalorder %s17, 2
    %p56 = scmp.ne.s32.totalorder %s51, %s53
    %p57 = scmp.eq.s32.totalorder %s17, 0
    %p58 = por %p56, %p57
    %p59 = scmp.ne.s32.totalorder %s51, %s53
    %p60 = scmp.eq.s32.totalorder %s22, 2
    %p61 = por %p59, %p60
    %p62 = scmp.ne.s32.totalorder %s53, %s54
    %p63 = scmp.eq.s32.totalorder %s22, 0
    %p64 = por %p62, %p63
    %p65 = scmp.ne.s32.totalorder %s53, %s54
    %p66 = scmp.eq.s32.totalorder %s23, 2
    %p67 = por %p65, %p66
    %p69 = scmp.ne.s32.totalorder %s54, %s68
    %p70 = scmp.eq.s32.totalorder %s23, 0
    %p71 = por %p69, %p70
    %s73 = sadd.s32 %s72, 1
    %p76 = scmp.eq.s32.totalorder %s17, 2
    %p77 = scmp.ne.s32.totalorder %s72, %s74
    %p78 = scmp.eq.s32.totalorder %s17, 0
    %p79 = por %p77, %p78
    %p80 = scmp.ne.s32.totalorder %s72, %s74
    %p81 = scmp.eq.s32.totalorder %s22, 2
    %p82 = por %p80, %p81
    %p83 = scmp.ne.s32.totalorder %s74, %s75
    %p84 = scmp.eq.s32.totalorder %s22, 0
    %p85 = por %p83, %p84
    %p86 = scmp.ne.s32.totalorder %s74, %s75
    %p87 = scmp.eq.s32.totalorder %s23, 2
    %p88 = por %p86, %p87
    %p90 = scmp.ne.s32.totalorder %s75, %s89
    %p91 = scmp.eq.s32.totalorder %s23, 0
    %p92 = por %p90, %p91
    %s94 = sadd.s32 %s93, 1
    %p97 = scmp.eq.s32.totalorder %s17, 2
    %p98 = scmp.ne.s32.totalorder %s93, %s95
    %p99 = scmp.eq.s32.totalorder %s17, 0
    %p100 = por %p98, %p99
    %p101 = scmp.ne.s32.totalorder %s93, %s95
    %p102 = scmp.eq.s32.totalorder %s22, 2
    %p103 = por %p101, %p102
    %p104 = scmp.ne.s32.totalorder %s95, %s96
    %p105 = scmp.eq.s32.totalorder %s22, 0
    %p106 = por %p104, %p105
    %p107 = scmp.ne.s32.totalorder %s95, %s96
    %p108 = scmp.eq.s32.totalorder %s23, 2
    %p109 = por %p107, %p108
    %p111 = scmp.ne.s32.totalorder %s96, %s110
    %p112 = scmp.eq.s32.totalorder %s23, 0
    %p113 = por %p111, %p112
    %s115 = sadd.s32 %s114, 1
    %p118 = scmp.eq.s32.totalorder %s17, 2
    %p119 = scmp.ne.s32.totalorder %s114, %s116
    %p120 = scmp.eq.s32.totalorder %s17, 0
    %p121 = por %p119, %p120
    %p122 = scmp.ne.s32.totalorder %s114, %s116
    %p123 = scmp.eq.s32.totalorder %s22, 2
    %p124 = por %p122, %p123
    %p125 = scmp.ne.s32.totalorder %s116, %s117
    %p126 = scmp.eq.s32.totalorder %s22, 0
    %p127 = por %p125, %p126
    %p128 = scmp.ne.s32.totalorder %s116, %s117
    %p129 = scmp.eq.s32.totalorder %s23, 2
    %p130 = por %p128, %p129
    %p132 = scmp.ne.s32.totalorder %s117, %s131
    %p133 = scmp.eq.s32.totalorder %s23, 0
    %p134 = por %p132, %p133
    %s136 = sadd.s32 %s135, 1
    %p139 = scmp.eq.s32.totalorder %s17, 2
    %p140 = scmp.ne.s32.totalorder %s135, %s137
    %p141 = scmp.eq.s32.totalorder %s17, 0
    %p142 = por %p140, %p141
    %p143 = scmp.ne.s32.totalorder %s135, %s137
    %p144 = scmp.eq.s32.totalorder %s22, 2
    %p145 = por %p143, %p144
    %p146 = scmp.ne.s32.totalorder %s137, %s138
    %p147 = scmp.eq.s32.totalorder %s22, 0
    %p148 = por %p146, %p147
    %p149 = scmp.ne.s32.totalorder %s137, %s138
    %p150 = scmp.eq.s32.totalorder %s23, 2
    %p151 = por %p149, %p150
    %p153 = scmp.ne.s32.totalorder %s138, %s152
    %p154 = scmp.eq.s32.totalorder %s23, 0
    %p155 = por %p153, %p154
    %s157 = sadd.s32 %s156, 1
    %p160 = scmp.eq.s32.totalorder %s17, 2
    %p161 = scmp.ne.s32.totalorder %s156, %s158
    %p162 = scmp.eq.s32.totalorder %s17, 0
    %p163 = por %p161, %p162
    %p164 = scmp.ne.s32.totalorder %s156, %s158
    %p165 = scmp.eq.s32.totalorder %s22, 2
    %p166 = por %p164, %p165
    %p167 = scmp.ne.s32.totalorder %s158, %s159
    %p168 = scmp.eq.s32.totalorder %s22, 0
    %p169 = por %p167, %p168
    %p170 = scmp.ne.s32.totalorder %s158, %s159
    %p171 = scmp.eq.s32.totalorder %s23, 2
    %p172 = por %p170, %p171
    %p174 = scmp.ne.s32.totalorder %s159, %s173
    %p175 = scmp.eq.s32.totalorder %s23, 0
    %p176 = por %p174, %p175
    %s178 = sadd.s32 %s177, 1
    %p181 = scmp.eq.s32.totalorder %s17, 2
    %p182 = scmp.ne.s32.totalorder %s177, %s179
    %p183 = scmp.eq.s32.totalorder %s17, 0
    %p184 = por %p182, %p183
    %p185 = scmp.ne.s32.totalorder %s177, %s179
    %p186 = scmp.eq.s32.totalorder %s22, 2
    %p187 = por %p185, %p186
    %p188 = scmp.ne.s32.totalorder %s179, %s180
    %p189 = scmp.eq.s32.totalorder %s22, 0
    %p190 = por %p188, %p189
    %p191 = scmp.ne.s32.totalorder %s179, %s180
    %p192 = scmp.eq.s32.totalorder %s23, 2
    %p193 = por %p191, %p192
    %p195 = scmp.ne.s32.totalorder %s180, %s194
    %p196 = scmp.eq.s32.totalorder %s23, 0
    %p197 = por %p195, %p196
    %s199 = sadd.s32 %s198, 1
    %p202 = scmp.eq.s32.totalorder %s17, 2
    %p203 = scmp.ne.s32.totalorder %s198, %s200
    %p204 = scmp.eq.s32.totalorder %s17, 0
    %p205 = por %p203, %p204
    %p206 = scmp.ne.s32.totalorder %s198, %s200
    %p207 = scmp.eq.s32.totalorder %s22, 2
    %p208 = por %p206, %p207
    %p209 = scmp.ne.s32.totalorder %s200, %s201
    %p210 = scmp.eq.s32.totalorder %s22, 0
    %p211 = por %p209, %p210
    %p212 = scmp.ne.s32.totalorder %s200, %s201
    %p213 = scmp.eq.s32.totalorder %s23, 2
    %p214 = por %p212, %p213
    %p216 = scmp.ne.s32.totalorder %s201, %s215
    %p217 = scmp.eq.s32.totalorder %s23, 0
    %p218 = por %p216, %p217
    %s219 = ssub.s32 %s17, %s24
    %p220 = scmp.eq.s32.totalorder %s219, 0
    %s222 = sadd.s32 %s221, 1
    %s223 = scalar_select %p220, %s221, %s222
    %p226 = pneg %p220
    %p227 = scmp.eq.s32.totalorder %s17, 2
    %p228 = por %p226, %p227
    %p229 = scmp.ne.s32.totalorder %s221, %s224
    %p230 = scmp.eq.s32.totalorder %s17, 0
    %p231 = por %p229, %p230
    %p232 = scmp.ne.s32.totalorder %s221, %s224
    %p233 = scmp.eq.s32.totalorder %s22, 2
    %p234 = por %p232, %p233
    %p235 = scmp.ne.s32.totalorder %s224, %s225
    %p236 = scmp.eq.s32.totalorder %s22, 0
    %p237 = por %p235, %p236
    %p238 = scmp.ne.s32.totalorder %s224, %s225
    %p239 = scmp.eq.s32.totalorder %s23, 2
    %p240 = por %p238, %p239
    %p242 = scmp.ne.s32.totalorder %s225, %s241
    %p243 = scmp.eq.s32.totalorder %s23, 0
    %p244 = por %p242, %p243
    %p245 = scmp.le.s32.totalorder 1, %s17
    %p246 = scmp.lt.s32.totalorder %s17, 4
    %p247 = pnand %p245, %p246
    %p248 = pneg %p247
    // Predicated region
    $region9: #{dueling_dqn_forward.1} parent=5 // pred_check
      _
    $region10: #{dueling_dqn_forward.1} parent=5 // pred_check_branch
      %250 = sbr.rel (%p247) target = $region12
    $region11: #{dueling_dqn_forward.1} parent=5 // pred_region
      %s251 = ssub.s32 %s17, 1
      // Predicated region
      $region13: #{dueling_dqn_forward.1} parent=11 // pred_check
        %p252 = pneg %p64
      $region14: #{dueling_dqn_forward.1} parent=11 // pred_check_branch
        %254 = sbr.rel (%p252) target = $region16
      $region15: #{dueling_dqn_forward.1} parent=11 // pred_region
        _
      $region16: #{dueling_dqn_forward.1} parent=11 // pred_fallthru
        _
      // Predicated region
      $region17: #{dueling_dqn_forward.1} parent=11 // pred_check
        %p255 = pneg %p85
      $region18: #{dueling_dqn_forward.1} parent=11 // pred_check_branch
        %257 = sbr.rel (%p255) target = $region20
      $region19: #{dueling_dqn_forward.1} parent=11 // pred_region
        _
      $region20: #{dueling_dqn_forward.1} parent=11 // pred_fallthru
        _
      // Predicated region
      $region21: #{dueling_dqn_forward.1} parent=11 // pred_check
        %p258 = pneg %p106
      $region22: #{dueling_dqn_forward.1} parent=11 // pred_check_branch
        %260 = sbr.rel (%p258) target = $region24
      $region23: #{dueling_dqn_forward.1} parent=11 // pred_region
        _
      $region24: #{dueling_dqn_forward.1} parent=11 // pred_fallthru
        _
      // Predicated region
      $region25: #{dueling_dqn_forward.1} parent=11 // pred_check
        %p261 = pneg %p127
      $region26: #{dueling_dqn_forward.1} parent=11 // pred_check_branch
        %263 = sbr.rel (%p261) target = $region28
      $region27: #{dueling_dqn_forward.1} parent=11 // pred_region
        _
      $region28: #{dueling_dqn_forward.1} parent=11 // pred_fallthru
        _
      // Predicated region
      $region29: #{dueling_dqn_forward.1} parent=11 // pred_check
        %p264 = pneg %p148
      $region30: #{dueling_dqn_forward.1} parent=11 // pred_check_branch
        %266 = sbr.rel (%p264) target = $region32
      $region31: #{dueling_dqn_forward.1} parent=11 // pred_region
        _
      $region32: #{dueling_dqn_forward.1} parent=11 // pred_fallthru
        _
      // Predicated region
      $region33: #{dueling_dqn_forward.1} parent=11 // pred_check
        %p267 = pneg %p169
      $region34: #{dueling_dqn_forward.1} parent=11 // pred_check_branch
        %269 = sbr.rel (%p267) target = $region36
      $region35: #{dueling_dqn_forward.1} parent=11 // pred_region
        _
      $region36: #{dueling_dqn_forward.1} parent=11 // pred_fallthru
        _
      // Predicated region
      $region37: #{dueling_dqn_forward.1} parent=11 // pred_check
        %p270 = pneg %p190
      $region38: #{dueling_dqn_forward.1} parent=11 // pred_check_branch
        %272 = sbr.rel (%p270) target = $region40
      $region39: #{dueling_dqn_forward.1} parent=11 // pred_region
        _
      $region40: #{dueling_dqn_forward.1} parent=11 // pred_fallthru
        _
      // Predicated region
      $region41: #{dueling_dqn_forward.1} parent=11 // pred_check
        %p273 = pneg %p211
      $region42: #{dueling_dqn_forward.1} parent=11 // pred_check_branch
        %275 = sbr.rel (%p273) target = $region44
      $region43: #{dueling_dqn_forward.1} parent=11 // pred_region
        _
      $region44: #{dueling_dqn_forward.1} parent=11 // pred_fallthru
        _
    $region12: #{dueling_dqn_forward.1} parent=5 // pred_fallthru
      _
    %p276 = scmp.lt.s32.totalorder %s17, 3
    // Predicated region
    $region45: #{dueling_dqn_forward.1} parent=5 // pred_check
      %p277 = pneg %p276
    $region46: #{dueling_dqn_forward.1} parent=5 // pred_check_branch
      %279 = sbr.rel (%p277) target = $region48
    $region47: #{dueling_dqn_forward.1} parent=5 // pred_region
      // Predicated region
      $region49: #{dueling_dqn_forward.1} parent=47 // pred_check
        %p280 = pneg %p37
      $region50: #{dueling_dqn_forward.1} parent=47 // pred_check_branch
        %282 = sbr.rel (%p280) target = $region52
      $region51: #{dueling_dqn_forward.1} parent=47 // pred_region
        %p283 = scmp.lt.s32.totalorder %s17, 2
        %s284 = scalar_select %p283, %s17, 2
        %s285 = smul.addr %s284, 4
        %s286 = scalar_lea.vmem %s0, %s285
      $region52: #{dueling_dqn_forward.1} parent=47 // pred_fallthru
        _
    $region48: #{dueling_dqn_forward.1} parent=5 // pred_fallthru
      _
    %p287 = scmp.le.s32.totalorder 1, %s17
    %p288 = scmp.lt.s32.totalorder %s17, 4
    %p289 = pnand %p287, %p288
    %p290 = pneg %p289
    // Predicated region
    $region53: #{dueling_dqn_forward.1} parent=5 // pred_check
      _
    $region54: #{dueling_dqn_forward.1} parent=5 // pred_check_branch
      %292 = sbr.rel (%p289) target = $region56
    $region55: #{dueling_dqn_forward.1} parent=5 // pred_region
      %s293 = ssub.s32 %s17, 1
      %p294 = scmp.lt.s32.totalorder %s22, 2
      %s295 = scalar_select %p294, %s22, 2
      %s296 = smul.addr %s295, 4
      %s297 = scalar_lea.vmem %s0, %s296
      %p298 = pneg %p43
      %p299 = pneg %p40
      %p300 = pneg %p64
      %p301 = pneg %p61
      %p302 = pneg %p85
      %p303 = pneg %p82
      %p304 = pneg %p106
      %p305 = pneg %p103
      %p306 = pneg %p127
      %p307 = pneg %p124
      %p308 = pneg %p148
      %p309 = pneg %p145
      %p310 = pneg %p169
      %p311 = pneg %p166
      %p312 = pneg %p190
      %p313 = pneg %p187
      %p314 = pneg %p211
      %p315 = pneg %p208
      %p316 = pneg %p237
      %p317 = pneg %p234
      %p318 = scmp.lt.s32.totalorder %s22, 2
      %s319 = scalar_select %p318, %s22, 2
      %s320 = smul.addr %s319, 8
      %s321 = scalar_lea.vmem %s9, %s320
      %p322 = scmp.lt.s32.totalorder %s22, 2
      %s323 = scalar_select %p322, %s22, 2
      %s324 = smul.addr %s323, 4
      %s325 = scalar_lea.vmem %s0, %s324
      %p326 = scmp.lt.s32.totalorder %s22, 2
      %s327 = scalar_select %p326, %s22, 2
      %s328 = smul.addr %s327, 8
      %s329 = scalar_lea.vmem %s9, %s328
      %v331 = vld [vmem:[%s325] sm:$0xf]
      %v332 = vld [vmem:[%s1] sm:$0xf]
      %v333 = vld [vmem:[%s1 + $0x4] sm:$0xf]
      %v334 = vld [vmem:[%s2] sm:$0x1]
      %v336 = vlaneseq
      %v337 = vshrl.u32 %v336, 7
      %v338 = vsub.s32 0, %v337
      %v339 = vrot.slane %v334, %v338
      %v343 = vunpack.c.l.b16 %v332
      %v344 = vunpack.c.l.b16 %v333
      %v345 = vpack.c.b16 %v344, %v343
      %vm347 = vcmask 130048
      %v349 = vsel %vm347, %v331, 0
      %351 = vmatprep.subr.bf16.mxu0 0
      %352 = vmatpush1.bf16.msra.mxu0 %v345
      %353 = vmatprep.subr.bf16.mxu0 0
      %354 = vmatpush1.bf16.msra.mxu0 0
      %355 = vmatprep.subr.bf16.mxu0 0
      %356 = vmatpush1.bf16.msra.mxu0 0
      %357 = vmatprep.subr.bf16.mxu0 0
      %358 = vmatpush1.bf16.msra.mxu0 0
      %359 = vmatprep.subr.bf16.mxu0 0
      %360 = vmatpush1.bf16.msra.mxu0 0
      %361 = vmatprep.subr.bf16.mxu0 0
      %362 = vmatpush1.bf16.msra.mxu0 0
      %363 = vmatprep.subr.bf16.mxu0 0
      %364 = vmatpush1.bf16.msra.mxu0 0
      %365 = vmatprep.subr.bf16.mxu0 0
      %366 = vmatpush1.bf16.msra.mxu0 0
      %367 = vmatprep.subr.bf16.mxu0 0
      %368 = vmatpush1.bf16.msra.mxu0 0
      %369 = vmatprep.subr.bf16.mxu0 0
      %370 = vmatpush1.bf16.msra.mxu0 0
      %371 = vmatprep.subr.bf16.mxu0 0
      %372 = vmatpush1.bf16.msra.mxu0 0
      %373 = vmatprep.subr.bf16.mxu0 0
      %374 = vmatpush1.bf16.msra.mxu0 0
      %375 = vmatprep.subr.bf16.mxu0 0
      %376 = vmatpush1.bf16.msra.mxu0 0
      %377 = vmatprep.subr.bf16.mxu0 0
      %378 = vmatpush1.bf16.msra.mxu0 0
      %379 = vmatprep.subr.bf16.mxu0 0
      %380 = vmatpush1.bf16.msra.mxu0 0
      %381 = vmatprep.subr.bf16.mxu0 0
      %382 = vmatpush1.bf16.msra.mxu0 0
      %383 = vmatprep.mubr.bf16.mxu0 0
      %384 = vmatmul.mubr.bf16.gmra.mrb[0].mxu0 %v349
      %v385 = vpop.f32.mrb[0].mxu0
      %v386 = vadd.f32 %v339, %v385
      %v387 = vpop.f32.mrb[0].mxu0
      %v388 = vpop.f32.mrb[0].mxu0
      %v389 = vpop.f32.mrb[0].mxu0
      %390 = vdwg.mxu0
      %v391 = vmax.f32 %v386, 0.0
      %v392 = vpack.c.bf16 %v391, %v391
      %v393 = vld [vmem:[%s3] sm:$0xff]
      %v394 = vld [vmem:[%s3 + $0x8] sm:$0xff]
      %v395 = vld [vmem:[%s3 + $0x10] sm:$0xff]
      %v396 = vld [vmem:[%s3 + $0x18] sm:$0xff]
      %v397 = vld [vmem:[%s3 + $0x20] sm:$0xff]
      %v398 = vld [vmem:[%s3 + $0x28] sm:$0xff]
      %v399 = vld [vmem:[%s3 + $0x30] sm:$0xff]
      %v400 = vld [vmem:[%s3 + $0x38] sm:$0xff]
      %v401 = vld [vmem:[%s3 + $0x40] sm:$0xff]
      %v402 = vld [vmem:[%s3 + $0x48] sm:$0xff]
      %v403 = vld [vmem:[%s3 + $0x50] sm:$0xff]
      %v404 = vld [vmem:[%s3 + $0x58] sm:$0xff]
      %v405 = vld [vmem:[%s3 + $0x60] sm:$0xff]
      %v406 = vld [vmem:[%s3 + $0x68] sm:$0xff]
      %v407 = vld [vmem:[%s3 + $0x70] sm:$0xff]
      %v408 = vld [vmem:[%s3 + $0x78] sm:$0xff]
      %v409 = vld [vmem:[%s4] sm:$0x3]
      %v411 = vlaneseq
      %v412 = vshrl.u32 %v411, 7
      %v413 = vsub.s32 0, %v412
      %v414 = vrot.slane %v409, %v413
      %v415 = vlaneseq
      %v416 = vshrl.u32 %v415, 7
      %v417 = vsub.s32 1, %v416
      %v418 = vrot.slane %v409, %v417
      %v437 = vunpack.c.l.b16 %v393
      %v438 = vunpack.c.h.b16 %v393
      %v439 = vunpack.c.l.b16 %v394
      %v440 = vunpack.c.h.b16 %v394
      %v441 = vunpack.c.l.b16 %v395
      %v442 = vunpack.c.h.b16 %v395
      %v443 = vunpack.c.l.b16 %v396
      %v444 = vunpack.c.h.b16 %v396
      %v445 = vunpack.c.l.b16 %v397
      %v446 = vunpack.c.h.b16 %v397
      %v447 = vunpack.c.l.b16 %v398
      %v448 = vunpack.c.h.b16 %v398
      %v449 = vunpack.c.l.b16 %v399
      %v450 = vunpack.c.h.b16 %v399
      %v451 = vunpack.c.l.b16 %v400
      %v452 = vunpack.c.h.b16 %v400
      %v453 = vunpack.c.l.b16 %v401
      %v454 = vunpack.c.h.b16 %v401
      %v455 = vunpack.c.l.b16 %v402
      %v456 = vunpack.c.h.b16 %v402
      %v457 = vunpack.c.l.b16 %v403
      %v458 = vunpack.c.h.b16 %v403
      %v459 = vunpack.c.l.b16 %v404
      %v460 = vunpack.c.h.b16 %v404
      %v461 = vunpack.c.l.b16 %v405
      %v462 = vunpack.c.h.b16 %v405
      %v463 = vunpack.c.l.b16 %v406
      %v464 = vunpack.c.h.b16 %v406
      %v465 = vunpack.c.l.b16 %v407
      %v466 = vunpack.c.h.b16 %v407
      %v467 = vunpack.c.l.b16 %v408
      %v468 = vunpack.c.h.b16 %v408
      %v469 = vpack.c.b16 %v439, %v437
      %v470 = vpack.c.b16 %v440, %v438
      %v471 = vpack.c.b16 %v443, %v441
      %v472 = vpack.c.b16 %v444, %v442
      %v473 = vpack.c.b16 %v447, %v445
      %v474 = vpack.c.b16 %v448, %v446
      %v475 = vpack.c.b16 %v451, %v449
      %v476 = vpack.c.b16 %v452, %v450
      %v477 = vpack.c.b16 %v455, %v453
      %v478 = vpack.c.b16 %v456, %v454
      %v479 = vpack.c.b16 %v459, %v457
      %v480 = vpack.c.b16 %v460, %v458
      %v481 = vpack.c.b16 %v463, %v461
      %v482 = vpack.c.b16 %v464, %v462
      %v483 = vpack.c.b16 %v467, %v465
      %v484 = vpack.c.b16 %v468, %v466
      %501 = vmatprep.subr.bf16.mxu0 %v470
      %502 = vmatpush1.bf16.msra.mxu0 %v469
      %503 = vmatprep.subr.bf16.mxu0 %v472
      %504 = vmatpush1.bf16.msra.mxu0 %v471
      %505 = vmatprep.subr.bf16.mxu0 %v474
      %506 = vmatpush1.bf16.msra.mxu0 %v473
      %507 = vmatprep.subr.bf16.mxu0 %v476
      %508 = vmatpush1.bf16.msra.mxu0 %v475
      %509 = vmatprep.subr.bf16.mxu0 %v478
      %510 = vmatpush1.bf16.msra.mxu0 %v477
      %511 = vmatprep.subr.bf16.mxu0 %v480
      %512 = vmatpush1.bf16.msra.mxu0 %v479
      %513 = vmatprep.subr.bf16.mxu0 %v482
      %514 = vmatpush1.bf16.msra.mxu0 %v481
      %515 = vmatprep.subr.bf16.mxu0 %v484
      %516 = vmatpush1.bf16.msra.mxu0 %v483
      %517 = vmatprep.subr.bf16.mxu0 0
      %518 = vmatpush1.bf16.msra.mxu0 0
      %519 = vmatprep.subr.bf16.mxu0 0
      %520 = vmatpush1.bf16.msra.mxu0 0
      %521 = vmatprep.subr.bf16.mxu0 0
      %522 = vmatpush1.bf16.msra.mxu0 0
      %523 = vmatprep.subr.bf16.mxu0 0
      %524 = vmatpush1.bf16.msra.mxu0 0
      %525 = vmatprep.subr.bf16.mxu0 0
      %526 = vmatpush1.bf16.msra.mxu0 0
      %527 = vmatprep.subr.bf16.mxu0 0
      %528 = vmatpush1.bf16.msra.mxu0 0
      %529 = vmatprep.subr.bf16.mxu0 0
      %530 = vmatpush1.bf16.msra.mxu0 0
      %531 = vmatprep.subr.bf16.mxu0 0
      %532 = vmatpush1.bf16.msra.mxu0 0
      %533 = vmatprep.mubr.bf16.mxu0 0
      %534 = vmatmul.mubr.bf16.gmra.mrb[0].mxu0 %v392
      %v535 = vpop.f32.mrb[0].mxu0
      %v536 = vadd.f32 %v414, %v535
      %v537 = vpop.f32.mrb[0].mxu0
      %v538 = vadd.f32 %v418, %v537
      %v539 = vpop.f32.mrb[0].mxu0
      %v540 = vpop.f32.mrb[0].mxu0
      %541 = vdwg.mxu0
      %v542 = vmax.f32 %v536, 0.0
      %v543 = vmax.f32 %v538, 0.0
      %v544 = vld [vmem:[%s5] sm:$0x1]
      %v546 = vlaneseq
      %v547 = vshrl.u32 %v546, 7
      %v548 = vsub.s32 0, %v547
      %v549 = vrot.slane %v544, %v548
      %v551 = vmul.f32 %v542, %v549
      %552 = vadd.xlane.f32.xlu0 %v551
      %v553 = vpop.xlane.xlu0 %552
      %v554 = vld [vmem:[#allocation2] sm:$0x1]
      %v556 = vlaneseq
      %v557 = vshrl.u32 %v556, 7
      %v558 = vsub.s32 0, %v557
      %v559 = vrot.slane %v554, %v558
      %v561 = vadd.f32 %v553, %v559
      %v562 = vpack.c.bf16 %v543, %v543
      %v563 = vld [vmem:[%s7] sm:$0xf]
      %v564 = vld [vmem:[%s7 + $0x4] sm:$0xf]
      %v565 = vld [vmem:[%s7 + $0x8] sm:$0xf]
      %v566 = vld [vmem:[%s7 + $0xc] sm:$0xf]
      %v567 = vld [vmem:[%s7 + $0x10] sm:$0xf]
      %v568 = vld [vmem:[%s7 + $0x14] sm:$0xf]
      %v569 = vld [vmem:[%s7 + $0x18] sm:$0xf]
      %v570 = vld [vmem:[%s7 + $0x1c] sm:$0xf]
      %v571 = vld [vmem:[%s7 + $0x20] sm:$0xf]
      %v572 = vld [vmem:[%s7 + $0x24] sm:$0xf]
      %v573 = vld [vmem:[%s7 + $0x28] sm:$0xf]
      %v574 = vld [vmem:[%s7 + $0x2c] sm:$0xf]
      %v575 = vld [vmem:[%s7 + $0x30] sm:$0xf]
      %v576 = vld [vmem:[%s7 + $0x34] sm:$0xf]
      %v577 = vld [vmem:[%s7 + $0x38] sm:$0xf]
      %v578 = vld [vmem:[%s7 + $0x3c] sm:$0xf]
      %v579 = vld [vmem:[%s8] sm:$0x1]
      %v581 = vlaneseq
      %v582 = vshrl.u32 %v581, 7
      %v583 = vsub.s32 0, %v582
      %v584 = vrot.slane %v579, %v583
      %v602 = vunpack.c.l.b16 %v563
      %v603 = vunpack.c.l.b16 %v564
      %v604 = vunpack.c.l.b16 %v565
      %v605 = vunpack.c.l.b16 %v566
      %v606 = vunpack.c.l.b16 %v567
      %v607 = vunpack.c.l.b16 %v568
      %v608 = vunpack.c.l.b16 %v569
      %v609 = vunpack.c.l.b16 %v570
      %v610 = vunpack.c.l.b16 %v571
      %v611 = vunpack.c.l.b16 %v572
      %v612 = vunpack.c.l.b16 %v573
      %v613 = vunpack.c.l.b16 %v574
      %v614 = vunpack.c.l.b16 %v575
      %v615 = vunpack.c.l.b16 %v576
      %v616 = vunpack.c.l.b16 %v577
      %v617 = vunpack.c.l.b16 %v578
      %v618 = vpack.c.b16 %v603, %v602
      %v619 = vpack.c.b16 %v605, %v604
      %v620 = vpack.c.b16 %v607, %v606
      %v621 = vpack.c.b16 %v609, %v608
      %v622 = vpack.c.b16 %v611, %v610
      %v623 = vpack.c.b16 %v613, %v612
      %v624 = vpack.c.b16 %v615, %v614
      %v625 = vpack.c.b16 %v617, %v616
      %634 = vmatprep.subr.bf16.mxu0 0
      %635 = vmatpush1.bf16.msra.mxu0 %v618
      %636 = vmatprep.subr.bf16.mxu0 0
      %637 = vmatpush1.bf16.msra.mxu0 %v619
      %638 = vmatprep.subr.bf16.mxu0 0
      %639 = vmatpush1.bf16.msra.mxu0 %v620
      %640 = vmatprep.subr.bf16.mxu0 0
      %641 = vmatpush1.bf16.msra.mxu0 %v621
      %642 = vmatprep.subr.bf16.mxu0 0
      %643 = vmatpush1.bf16.msra.mxu0 %v622
      %644 = vmatprep.subr.bf16.mxu0 0
      %645 = vmatpush1.bf16.msra.mxu0 %v623
      %646 = vmatprep.subr.bf16.mxu0 0
      %647 = vmatpush1.bf16.msra.mxu0 %v624
      %648 = vmatprep.subr.bf16.mxu0 0
      %649 = vmatpush1.bf16.msra.mxu0 %v625
      %650 = vmatprep.subr.bf16.mxu0 0
      %651 = vmatpush1.bf16.msra.mxu0 0
      %652 = vmatprep.subr.bf16.mxu0 0
      %653 = vmatpush1.bf16.msra.mxu0 0
      %654 = vmatprep.subr.bf16.mxu0 0
      %655 = vmatpush1.bf16.msra.mxu0 0
      %656 = vmatprep.subr.bf16.mxu0 0
      %657 = vmatpush1.bf16.msra.mxu0 0
      %658 = vmatprep.subr.bf16.mxu0 0
      %659 = vmatpush1.bf16.msra.mxu0 0
      %660 = vmatprep.subr.bf16.mxu0 0
      %661 = vmatpush1.bf16.msra.mxu0 0
      %662 = vmatprep.subr.bf16.mxu0 0
      %663 = vmatpush1.bf16.msra.mxu0 0
      %664 = vmatprep.subr.bf16.mxu0 0
      %665 = vmatpush1.bf16.msra.mxu0 0
      %666 = vmatprep.mubr.bf16.mxu0 0
      %667 = vmatmul.mubr.bf16.gmra.mrb[0].mxu0 %v562
      %v668 = vpop.f32.mrb[0].mxu0
      %v669 = vadd.f32 %v584, %v668
      %v670 = vpop.f32.mrb[0].mxu0
      %v671 = vpop.f32.mrb[0].mxu0
      %v672 = vpop.f32.mrb[0].mxu0
      %673 = vdwg.mxu0
      %674 = vadd.xlane.f32.xlu0 %v669
      %v675 = vpop.xlane.xlu0 %674
      %v676 = vmul.f32 %v675, 0.25
      %v677 = vsub.f32 %v669, %v676
      %679 = vset.pattern.permute.xlu0 0
      %680 = vperm.xlu0 %679, %v561
      %v681 = vpop.permute.xlu0 %680
      %v683 = vadd.f32 %v681, %v677
      %684 = vst [vmem:[%s329] sm:$0xff] %v683
      %p685 = scmp.lt.s32.totalorder %s22, 2
      %s686 = scalar_select %p685, %s22, 2
      %s687 = smul.addr %s686, 8
      %s688 = scalar_lea.vmem %s9, %s687
      // Predicated region
      $region57: #{dueling_dqn_forward.1} parent=55 // pred_check
        %p689 = pneg %p234
      $region58: #{dueling_dqn_forward.1} parent=55 // pred_check_branch
        %691 = sbr.rel (%p689) target = $region60
      $region59: #{dueling_dqn_forward.1} parent=55 // pred_region
        _
      $region60: #{dueling_dqn_forward.1} parent=55 // pred_fallthru
        _
    $region56: #{dueling_dqn_forward.1} parent=5 // pred_fallthru
      _
    %p692 = scmp.le.s32.totalorder 2, %s17
    // Predicated region
    $region61: #{dueling_dqn_forward.1} parent=5 // pred_check
      %p693 = pneg %p692
    $region62: #{dueling_dqn_forward.1} parent=5 // pred_check_branch
      %695 = sbr.rel (%p693) target = $region64
    $region63: #{dueling_dqn_forward.1} parent=5 // pred_region
      %s696 = ssub.s32 %s17, 2
      // Predicated region
      $region65: #{dueling_dqn_forward.1} parent=63 // pred_check
        %p697 = pneg %p240
      $region66: #{dueling_dqn_forward.1} parent=63 // pred_check_branch
        %699 = sbr.rel (%p697) target = $region68
      $region67: #{dueling_dqn_forward.1} parent=63 // pred_region
        %p700 = scmp.lt.s32.totalorder %s23, 2
        %s701 = scalar_select %p700, %s23, 2
        %s702 = smul.addr %s701, 8
        %s703 = scalar_lea.vmem %s9, %s702
      $region68: #{dueling_dqn_forward.1} parent=63 // pred_fallthru
        _
    $region64: #{dueling_dqn_forward.1} parent=5 // pred_fallthru
      _
  $region6: #{dueling_dqn_forward.1} parent=0 // loop_footer
    %s21 = sadd.s32 1, %s17
  $region7: #{dueling_dqn_forward.1} parent=0 // loop_footer_branch
    %16 = sbr.rel target = $region3
  $region8: #{dueling_dqn_forward.1} parent=0 // loop_exit
    _

</llo_original>
